<compile_context>
chip_gen: v6e
topology: v6e:2x2x1
jax: 0.10.0
libtpu: 0.0.40
codegen_flags: <defaults>
</compile_context>

<pallas_src>
import jax
import jax.numpy as jnp
from jax.experimental import pallas as pl
from jax.experimental.pallas import tpu as pltpu

KH, KW = 3, 3  # kernel size; stride=1, padding=1 (module defaults)


def _pick_wb(W, Cout, target_lanes=256):
    """Smallest divisor Wb of W with Wb*Cout >= target_lanes (lane-dense stores);
    falls back to W if Cout*W is still below the target (tiny shapes)."""
    for wb in range(1, W + 1):
        if W % wb == 0 and wb * Cout >= target_lanes:
            return wb
    return W


def _pick_bt(B, H, target_m=256):
    """Largest divisor Bt of B with Bt*(H+2) <= target_m+2, preferring >=2 grid steps."""
    best = 1
    for bt in range(1, B + 1):
        if B % bt == 0 and bt * (H + 2) <= target_m + 2 and (B // bt) >= 2:
            best = bt
    return best


def _make_kernel(bt, h, wb, c4, n_wblocks, cout):
    m = bt * (h + 2) - 2          # GEMM M: Bt stacked padded images, 2 rows slack
    kb = (wb + 2) * c4            # GEMM K: column window (with halo) x 4Cin
    nb = wb * cout                # GEMM N: lane-dense output columns per block

    def kernel(xp_ref, w_ref, b_ref, o_ref, acc_ref):
        # xp_ref : [Bt*(H+2), (W+2)*4Cin]  bf16, Bt padded images stacked on rows
        # w_ref  : [3, (Wb+2)*4Cin, Wb*Cout] bf16, shared banded weights (mean folded)
        # b_ref  : [1, Wb*Cout]             f32
        # o_ref  : [Bt*H, W*Cout]           out dtype
        # acc_ref: [M, Wb*Cout]             f32 VMEM accumulator (reused per block)
        for jb in range(n_wblocks):                 # static unroll over column blocks
            col0 = jb * wb * c4                     # window start (static lane offset)
            acc_ref[...] = jnp.dot(
                xp_ref[pl.ds(0, m), pl.ds(col0, kb)], w_ref[0],
                preferred_element_type=jnp.float32)
            for ky in range(1, KH):                 # 3 MXU passes, f32 accumulation
                acc_ref[...] += jnp.dot(
                    xp_ref[pl.ds(ky, m), pl.ds(col0, kb)], w_ref[ky],
                    preferred_element_type=jnp.float32)
            ocol0 = jb * nb
            for b in range(bt):                     # keep only the H valid rows / image
                rows = acc_ref[pl.ds(b * (h + 2), h), :] + b_ref[...]
                o_ref[pl.ds(b * h, h), pl.ds(ocol0, nb)] = rows.astype(o_ref.dtype)

    return kernel, m, kb, nb


@jax.jit
def downsample_conv2d(x, weight, bias):
    """Forward pass of DownSampleConv2d.

    x:      [B, Cin, 2H, 2W]   (NCHW, like PyTorch)
    weight: [Cout, Cin, 3, 3]  (OIHW, like PyTorch)
    bias:   [Cout]
    returns [B, Cout, H, W]    (NCHW)
    """
    B, Cin, H2, W2 = x.shape
    H, W = H2 // 2, W2 // 2
    Cout = weight.shape[0]
    C4 = 4 * Cin

    Wb = _pick_wb(W, Cout)
    Bt = _pick_bt(B, H)
    n_wblocks = W // Wb
    n_bblocks = B // Bt

    # --- activations: pixel_unshuffle to NHWC (torch channel order c*4 + 2di + dj),
    #     pad H/W halos in ONE pass, pack (col, channel) on lanes, stack Bt padded
    #     images along the sublane axis, cast bf16 for the MXU.
    xs = x.astype(jnp.bfloat16)
    xp = (xs.reshape(B, Cin, H, 2, W, 2)
            .transpose(0, 2, 4, 1, 3, 5)            # [B, H, W, Cin, 2, 2]
            .reshape(B, H, W, C4))                   # [B, H, W, 4Cin]
    xp = jnp.pad(xp, ((0, 0), (1, 1), (1, 1), (0, 0)))
    xp = xp.reshape(n_bblocks, Bt * (H + 2), (W + 2) * C4)

    # --- weights: fold the 1/4 chunk-mean (tile the Cin axis 4x, scale 0.25) and
    #     build ONE translation-invariant banded block [3, (Wb+2)*4Cin, Wb*Cout]
    #     shared by all column blocks (O(Wb^2) memory, small gather intermediate).
    #     torch.chunk groups channels as k*Cin+m, so s2d channel ch uses w[:, ch%Cin].
    w_hwio = weight.transpose(2, 3, 1, 0).astype(jnp.float32)   # [3,3,Cin,Cout]
    w_eff = 0.25 * jnp.tile(w_hwio, (1, 1, 4, 1))               # [3,3,4Cin,Cout]
    p = jnp.arange(Wb + 2)[:, None]                             # window input column
    q = jnp.arange(Wb)[None, :]                                 # block output column
    kx = p - q
    valid = (kx >= 0) & (kx < KW)
    band = w_eff[:, jnp.clip(kx, 0, KW - 1)]                    # [3,Wb+2,Wb,4Cin,Cout]
    band = jnp.where(valid[None, :, :, None, None], band, 0.0)
    band = (band.transpose(0, 1, 3, 2, 4)                       # [3,Wb+2,4Cin,Wb,Cout]
                .reshape(KH, (Wb + 2) * C4, Wb * Cout)
                .astype(jnp.bfloat16))

    b_tiled = jnp.tile(bias.astype(jnp.float32), (Wb,)).reshape(1, Wb * Cout)

    kernel, M, Kb, Nb = _make_kernel(Bt, H, Wb, C4, n_wblocks, Cout)
    Kfull = (W + 2) * C4
    Nfull = W * Cout
    out_dtype = x.dtype

    # --- VMEM budget: double-buffered activation/output, single-buffered weights,
    #     clamped so the request is safe on v7x (64 MiB physical VMEM).
    vmem_needed = (2 * Bt * (H + 2) * Kfull * 2                       # xp (bf16)
                   + 2 * Bt * H * Nfull * jnp.dtype(out_dtype).itemsize
                   + KH * Kb * Nb * 2                                 # band (bf16)
                   + Nb * 4                                           # bias
                   + M * Nb * 4)                                      # f32 accumulator
    vmem_limit = int(min(max(vmem_needed + (8 << 20), 32 << 20), 56 << 20))

    out_slab = pl.pallas_call(
        kernel,
        out_shape=jax.ShapeDtypeStruct((n_bblocks, Bt * H, Nfull), out_dtype),
        grid=(n_bblocks,),
        in_specs=[
            pl.BlockSpec((None, Bt * (H + 2), Kfull), lambda i: (i, 0, 0)),
            pl.BlockSpec((KH, Kb, Nb), lambda i: (0, 0, 0),
                         pipeline_mode=pl.Buffered(1)),      # resident, single buffer
            pl.BlockSpec((1, Nb), lambda i: (0, 0),
                         pipeline_mode=pl.Buffered(1)),      # resident, single buffer
        ],
        out_specs=pl.BlockSpec((None, Bt * H, Nfull), lambda i: (i, 0, 0)),
        scratch_shapes=[pltpu.VMEM((M, Nb), jnp.float32)],
        compiler_params=pltpu.CompilerParams(
            dimension_semantics=("parallel",),               # megacore sharding on v7x
            vmem_limit_bytes=vmem_limit),
    )(xp, band, b_tiled)

    # [B//Bt, Bt*H, W*Cout] -> [B, Cout, H, W]  (module contract is NCHW)
    return out_slab.reshape(B, H, W, Cout).transpose(0, 3, 1, 2)


def _reference(x, weight, bias):
    """Pure-JAX reference matching the PyTorch forward exactly (f32)."""
    B, C, H2, W2 = x.shape
    H, W = H2 // 2, W2 // 2
    s2d = (x.reshape(B, C, H, 2, W, 2)
             .transpose(0, 1, 3, 5, 2, 4)
             .reshape(B, 4 * C, H, W))
    mean = s2d.reshape(B, 4, C, H, W).mean(axis=1)
    out = jax.lax.conv_general_dilated(
        mean, weight, window_strides=(1, 1), padding=((1, 1), (1, 1)),
        dimension_numbers=("NCHW", "OIHW", "NCHW"),
        precision=jax.lax.Precision.HIGHEST)
    return out + bias[None, :, None, None]


if __name__ == "__main__":
    key = jax.random.PRNGKey(0)
    kx_, kw_, kb_ = jax.random.split(key, 3)

    B, Cin, Cout = 2, 4, 8
    H2 = W2 = 16  # input spatial; output spatial = 8x8

    x = jax.random.normal(kx_, (B, Cin, H2, W2), dtype=jnp.float32)

    # nn.Conv2d-style init: U(-1/sqrt(fan_in), +1/sqrt(fan_in))
    fan_in = Cin * KH * KW
    bound = float(1.0 / (fan_in ** 0.5))
    weight = jax.random.uniform(kw_, (Cout, Cin, KH, KW), jnp.float32,
                                minval=-bound, maxval=bound)
    bias = jax.random.uniform(kb_, (Cout,), jnp.float32,
                              minval=-bound, maxval=bound)

    out = jax.block_until_ready(downsample_conv2d(x, weight, bias))

    ref = _reference(x, weight, bias)
    assert out.shape == (B, Cout, H2 // 2, W2 // 2), out.shape
    max_err = float(jnp.max(jnp.abs(out - ref)))
    # bf16 MXU inputs / f32 accumulation -> bf16-class tolerance
    assert jnp.allclose(out, ref, rtol=2e-2, atol=1e-2), max_err

    print("KERNEL_OK")
</pallas_src>

<mosaic_0001>
module attributes {stable_mosaic.version = 11 : i64} {
  func.func @kernel(%arg0: i32, %arg1: memref<1x10x160xbf16, #tpu.memory_space<vmem>>, %arg2: memref<3x160x64xbf16, #tpu.memory_space<vmem>>, %arg3: memref<1x64xf32, #tpu.memory_space<vmem>>, %arg4: memref<1x8x64xf32, #tpu.memory_space<vmem>>, %arg5: memref<8x64xf32, #tpu.memory_space<vmem>>) attributes {dimension_semantics = [#tpu.dimension_semantics<parallel>], iteration_bounds = array<i64: 2>, scalar_prefetch = 0 : i64, scratch_operands = 1 : i64, tpu.core_type = #tpu.core_type<tc>, window_params = [{transform_indices = @transform_0, window_bounds = array<i64: 1, 10, 160>}, {pipeline_mode = #tpu.pipeline_mode<synchronous>, transform_indices = @transform_1, window_bounds = array<i64: 3, 160, 64>}, {pipeline_mode = #tpu.pipeline_mode<synchronous>, transform_indices = @transform_2, window_bounds = array<i64: 1, 64>}, {transform_indices = @transform_3, window_bounds = array<i64: 1, 8, 64>}]} {
    %c0 = arith.constant 0 : index
    %c0_0 = arith.constant 0 : index
    %c0_1 = arith.constant 0 : index
    %0 = vector.load %arg1[%c0, %c0_0, %c0_1] : memref<1x10x160xbf16, #tpu.memory_space<vmem>>, vector<1x8x160xbf16>
    %1 = vector.shape_cast %0 : vector<1x8x160xbf16> to vector<8x160xbf16>
    %c0_2 = arith.constant 0 : index
    %c0_3 = arith.constant 0 : index
    %c0_4 = arith.constant 0 : index
    %2 = vector.load %arg2[%c0_2, %c0_3, %c0_4] : memref<3x160x64xbf16, #tpu.memory_space<vmem>>, vector<1x160x64xbf16>
    %3 = vector.shape_cast %2 : vector<1x160x64xbf16> to vector<160x64xbf16>
    %cst = arith.constant dense<0.000000e+00> : vector<8x64xf32>
    %4 = tpu.matmul %1, %3, %cst {dimension_numbers = #tpu.dot_dimension_numbers<[1], [0], [0], [1], [0, 0, 1, 1], [], []>} : vector<8x160xbf16>, vector<160x64xbf16>, vector<8x64xf32> -> vector<8x64xf32>
    %c0_5 = arith.constant 0 : index
    %c0_6 = arith.constant 0 : index
    %5 = vector.load %arg5[%c0_5, %c0_6] : memref<8x64xf32, #tpu.memory_space<vmem>>, vector<8x64xf32>
    tpu.vector_store %arg5[%c0_5, %c0_6], %4 {strides = array<i32>} : memref<8x64xf32, #tpu.memory_space<vmem>>, vector<8x64xf32>,
    %c0_7 = arith.constant 0 : index
    %c0_8 = arith.constant 0 : index
    %6 = vector.load %arg5[%c0_7, %c0_8] : memref<8x64xf32, #tpu.memory_space<vmem>>, vector<8x64xf32>
    %c0_9 = arith.constant 0 : index
    %c1 = arith.constant 1 : index
    %c0_10 = arith.constant 0 : index
    %7 = vector.load %arg1[%c0_9, %c1, %c0_10] : memref<1x10x160xbf16, #tpu.memory_space<vmem>>, vector<1x8x160xbf16>
    %8 = vector.shape_cast %7 : vector<1x8x160xbf16> to vector<8x160xbf16>
    %c1_11 = arith.constant 1 : index
    %c0_12 = arith.constant 0 : index
    %c0_13 = arith.constant 0 : index
    %9 = vector.load %arg2[%c1_11, %c0_12, %c0_13] : memref<3x160x64xbf16, #tpu.memory_space<vmem>>, vector<1x160x64xbf16>
    %10 = vector.shape_cast %9 : vector<1x160x64xbf16> to vector<160x64xbf16>
    %cst_14 = arith.constant dense<0.000000e+00> : vector<8x64xf32>
    %11 = tpu.matmul %8, %10, %cst_14 {dimension_numbers = #tpu.dot_dimension_numbers<[1], [0], [0], [1], [0, 0, 1, 1], [], []>} : vector<8x160xbf16>, vector<160x64xbf16>, vector<8x64xf32> -> vector<8x64xf32>
    %12 = arith.addf %6, %11 : vector<8x64xf32>
    %c0_15 = arith.constant 0 : index
    %c0_16 = arith.constant 0 : index
    %13 = vector.load %arg5[%c0_15, %c0_16] : memref<8x64xf32, #tpu.memory_space<vmem>>, vector<8x64xf32>
    tpu.vector_store %arg5[%c0_15, %c0_16], %12 {strides = array<i32>} : memref<8x64xf32, #tpu.memory_space<vmem>>, vector<8x64xf32>,
    %c0_17 = arith.constant 0 : index
    %c0_18 = arith.constant 0 : index
    %14 = vector.load %arg5[%c0_17, %c0_18] : memref<8x64xf32, #tpu.memory_space<vmem>>, vector<8x64xf32>
    %c0_19 = arith.constant 0 : index
    %c2 = arith.constant 2 : index
    %c0_20 = arith.constant 0 : index
    %15 = vector.load %arg1[%c0_19, %c2, %c0_20] : memref<1x10x160xbf16, #tpu.memory_space<vmem>>, vector<1x8x160xbf16>
    %16 = vector.shape_cast %15 : vector<1x8x160xbf16> to vector<8x160xbf16>
    %c2_21 = arith.constant 2 : index
    %c0_22 = arith.constant 0 : index
    %c0_23 = arith.constant 0 : index
    %17 = vector.load %arg2[%c2_21, %c0_22, %c0_23] : memref<3x160x64xbf16, #tpu.memory_space<vmem>>, vector<1x160x64xbf16>
    %18 = vector.shape_cast %17 : vector<1x160x64xbf16> to vector<160x64xbf16>
    %cst_24 = arith.constant dense<0.000000e+00> : vector<8x64xf32>
    %19 = tpu.matmul %16, %18, %cst_24 {dimension_numbers = #tpu.dot_dimension_numbers<[1], [0], [0], [1], [0, 0, 1, 1], [], []>} : vector<8x160xbf16>, vector<160x64xbf16>, vector<8x64xf32> -> vector<8x64xf32>
    %20 = arith.addf %14, %19 : vector<8x64xf32>
    %c0_25 = arith.constant 0 : index
    %c0_26 = arith.constant 0 : index
    %21 = vector.load %arg5[%c0_25, %c0_26] : memref<8x64xf32, #tpu.memory_space<vmem>>, vector<8x64xf32>
    tpu.vector_store %arg5[%c0_25, %c0_26], %20 {strides = array<i32>} : memref<8x64xf32, #tpu.memory_space<vmem>>, vector<8x64xf32>,
    %c0_27 = arith.constant 0 : index
    %c0_28 = arith.constant 0 : index
    %22 = vector.load %arg5[%c0_27, %c0_28] : memref<8x64xf32, #tpu.memory_space<vmem>>, vector<8x64xf32>
    %c0_29 = arith.constant 0 : index
    %c0_30 = arith.constant 0 : index
    %23 = vector.load %arg3[%c0_29, %c0_30] : memref<1x64xf32, #tpu.memory_space<vmem>>, vector<1x64xf32>
    %24 = vector.broadcast %23 : vector<1x64xf32> to vector<8x64xf32>
    %25 = arith.addf %22, %24 : vector<8x64xf32>
    %c0_31 = arith.constant 0 : index
    %c0_32 = arith.constant 0 : index
    %c0_33 = arith.constant 0 : index
    %26 = vector.load %arg4[%c0_31, %c0_32, %c0_33] : memref<1x8x64xf32, #tpu.memory_space<vmem>>, vector<1x8x64xf32>
    %27 = vector.shape_cast %26 : vector<1x8x64xf32> to vector<8x64xf32>
    %28 = vector.shape_cast %25 : vector<8x64xf32> to vector<1x8x64xf32>
    tpu.vector_store %arg4[%c0_31, %c0_32, %c0_33], %28 {strides = array<i32>} : memref<1x8x64xf32, #tpu.memory_space<vmem>>, vector<1x8x64xf32>,
    return
  }
  func.func @transform_0(%arg0: i32) -> (i32, i32, i32) {
    %c0_i32 = arith.constant 0 : i32
    %c0_i32_0 = arith.constant 0 : i32
    %c0_i32_1 = arith.constant 0 : i32
    return %arg0, %c0_i32, %c0_i32_0 : i32, i32, i32
  }
  func.func @transform_1(%arg0: i32) -> (i32, i32, i32) {
    %c0_i32 = arith.constant 0 : i32
    %c0_i32_0 = arith.constant 0 : i32
    %c0_i32_1 = arith.constant 0 : i32
    %c0_i32_2 = arith.constant 0 : i32
    return %c0_i32, %c0_i32_0, %c0_i32_1 : i32, i32, i32
  }
  func.func @transform_2(%arg0: i32) -> (i32, i32) {
    %c0_i32 = arith.constant 0 : i32
    %c0_i32_0 = arith.constant 0 : i32
    %c0_i32_1 = arith.constant 0 : i32
    return %c0_i32, %c0_i32_0 : i32, i32
  }
  func.func @transform_3(%arg0: i32) -> (i32, i32, i32) {
    %c0_i32 = arith.constant 0 : i32
    %c0_i32_0 = arith.constant 0 : i32
    %c0_i32_1 = arith.constant 0 : i32
    return %arg0, %c0_i32, %c0_i32_0 : i32, i32, i32
  }
}

</mosaic_0001>

<llo_original>
// kernel: tile.18
$region0: #{tile.18}
  #allocation0 [shape = 's32[1]{0}', space=sflag, size = 0x4, scoped, tag = 'scoped memory for tile.18']
  %s0 = inlined_call_operand.vmem [shape: f32[8], index: 0, kind: input, shape index: {}]
  %s1 = inlined_call_operand.vmem [shape: f32[8,8], index: 1, kind: output, shape index: {}]
  // Predicated region
  $region2: #{tile.18} parent=0 // pred_check
    _
  $region3: #{tile.18} parent=0 // pred_check_branch
    %3 = sbr.rel (0) target = $region5
  $region4: #{tile.18} parent=0 // pred_region
    _
  $region5: #{tile.18} parent=0 // pred_fallthru
    _
  %v4 = vld [vmem:[%s0] ss:$0 sm:$0xff]
  %5 = vst [vmem:[%s1] sm:$0xff] %v4

// kernel: tile.19
$region0: #{tile.19}
  %s0 = inlined_call_operand.vmem [shape: f32[8,8], index: 0, kind: input, shape index: {}]
  %s1 = inlined_call_operand.vmem [shape: f32[1,64], index: 1, kind: output, shape index: {}]
  $region1: #{tile.19} parent=0
    #allocation0 [shape = 'u8[4096]{0}', space=vmem, size = 0x1000, scoped, tag = 'scoped mem for output reshape']
    %v2 = vld [vmem:[%s0] sm:$0x1]
    %vm3 = vcmask 64512
    %4 = vst.msk [vmem:[#allocation0] sm:$0x1] %vm3, %v2
    %s5 = scalar_lea.vmem %s0, 7
    %v6 = vld [vmem:[%s5] sm:$0x1]
    %7 = vrot.lane.b32.xlu0 %v6, 56
    %v8 = vpop.permute.xlu0 %7
    %vm9 = vcmask 523712
    %10 = vst.msk [vmem:[#allocation0] sm:$0x1] %vm9, %v8
    %s11 = scalar_lea.vmem %s0, 6
    %v12 = vld [vmem:[%s11] sm:$0x1]
    %13 = vrot.lane.b32.xlu0 %v12, 48
    %v14 = vpop.permute.xlu0 %13
    %vm15 = vcmask 458112
    %16 = vst.msk [vmem:[#allocation0] sm:$0x1] %vm15, %v14
    %s17 = scalar_lea.vmem %s0, 5
    %v18 = vld [vmem:[%s17] sm:$0x1]
    %19 = vrot.lane.b32.xlu0 %v18, 40
    %v20 = vpop.permute.xlu0 %19
    %vm21 = vcmask 392512
    %22 = vst.msk [vmem:[#allocation0] sm:$0x1] %vm21, %v20
    %s23 = scalar_lea.vmem %s0, 4
    %v24 = vld [vmem:[%s23] sm:$0x1]
    %25 = vrot.lane.b32.xlu0 %v24, 32
    %v26 = vpop.permute.xlu0 %25
    %vm27 = vcmask 326912
    %28 = vst.msk [vmem:[#allocation0] sm:$0x1] %vm27, %v26
    %s29 = scalar_lea.vmem %s0, 3
    %v30 = vld [vmem:[%s29] sm:$0x1]
    %31 = vrot.lane.b32.xlu0 %v30, 24
    %v32 = vpop.permute.xlu0 %31
    %vm33 = vcmask 261312
    %34 = vst.msk [vmem:[#allocation0] sm:$0x1] %vm33, %v32
    %s35 = scalar_lea.vmem %s0, 2
    %v36 = vld [vmem:[%s35] sm:$0x1]
    %37 = vrot.lane.b32.xlu0 %v36, 16
    %v38 = vpop.permute.xlu0 %37
    %vm39 = vcmask 195712
    %40 = vst.msk [vmem:[#allocation0] sm:$0x1] %vm39, %v38
    %s41 = scalar_lea.vmem %s0, 1
    %v42 = vld [vmem:[%s41] sm:$0x1]
    %43 = vrot.lane.b32.xlu0 %v42, 8
    %v44 = vpop.permute.xlu0 %43
    %vm45 = vcmask 130112
    %46 = vst.msk [vmem:[#allocation0] sm:$0x1] %vm45, %v44
    %s48 = sshll.u32 1, 1
    %s49 = ssub.s32 %s48, 1
    %v51 = vld [vmem:[#allocation0] sm:%s49]
    %s52 = sshll.u32 1, 1
    %s53 = ssub.s32 %s52, 1
    %54 = vst [vmem:[%s1] sm:%s53] %v51

// kernel: downsample_conv2d.1
$region0: #{downsample_conv2d.1}
  #allocation0 [shape = 'u32[]', space=smem, size = 0x4, offset = 0x4, fixed_abs, tag = 'smem constant byte address 0x4 - core index']
  #allocation1 [shape = 'u32[144,128]{1,0:T(1,128)}', space=vmem, size = 0x12000, scoped, tag = 'internal scratch']
  #allocation2 [shape = 'f32[8,64]{1,0:T(8,128)}', space=vmem, size = 0x1000, scoped, tag = 'scratch operand']
  %s0 = inlined_call_operand.vmem [shape: bf16[2,10,160], index: 0, kind: input, shape index: {}]
  %s1 = inlined_call_operand.vmem [shape: bf16[3,160,64], index: 1, kind: input, shape index: {}]
  %s2 = inlined_call_operand.vmem [shape: f32[1,64], index: 2, kind: input, shape index: {}]
  %s3 = inlined_call_operand.vmem [shape: f32[2,8,64], index: 3, kind: output, shape index: {}]
  %s4 = sld [smem:[#allocation0]]
  $region45: #{downsample_conv2d.1} parent=0
    _
  %s6 = ssub.s32 1, %s4
  %s7 = scalar_select 0, %s6, %s4
  loop: start=0, step=1, limit=4
  $region2: #{downsample_conv2d.1} parent=0 // loop_pre_header
    _
  $region3: #{downsample_conv2d.1} parent=0 // loop_header
    %s9 = sphi 0, %s13
    %p10 = scmp.ge.s32.totalorder %s9, 4
    %s19 = sphi 0, %s21
    %s22 = sphi 0, %s19
    %s23 = sphi 0, %s22
    %s39 = sphi 0, %s23
    %s43 = sphi 0, %s43
    %s45 = sphi 0, %s43
    %s46 = sphi 0, %s45
    %s60 = sphi 0, %s46
    %s64 = sphi 0, %s64
    %s66 = sphi 0, %s64
    %s67 = sphi 0, %s66
    %s81 = sphi 0, %s67
    %s87 = sphi 0, %s89
    %s90 = sphi 0, %s87
    %s91 = sphi 0, %s90
    %s107 = sphi 0, %s91
  $region4: #{downsample_conv2d.1} parent=0 // loop_header_branch
    %12 = sbr.rel (%p10) target = $region8
  $region5: #{downsample_conv2d.1} parent=0 // loop_body
    %s14 = ssub.s32 %s9, 1
    %s15 = ssub.s32 %s9, 2
    %s16 = sadd.s32 %s9, 1
    %s17 = ssub.s32 %s9, %s16
    %p18 = scmp.eq.s32.totalorder %s17, 0
    %s20 = sadd.s32 %s19, 1
    %s21 = scalar_select %p18, %s19, %s20
    %p24 = pneg %p18
    %p25 = scmp.eq.s32.totalorder %s9, 1
    %p26 = por %p24, %p25
    %p27 = scmp.ne.s32.totalorder %s19, %s22
    %p28 = scmp.eq.s32.totalorder %s9, 0
    %p29 = por %p27, %p28
    %p30 = scmp.ne.s32.totalorder %s19, %s22
    %p31 = scmp.eq.s32.totalorder %s14, 1
    %p32 = por %p30, %p31
    %p33 = scmp.ne.s32.totalorder %s22, %s23
    %p34 = scmp.eq.s32.totalorder %s14, 0
    %p35 = por %p33, %p34
    %p36 = scmp.ne.s32.totalorder %s22, %s23
    %p37 = scmp.eq.s32.totalorder %s15, 1
    %p38 = por %p36, %p37
    %p40 = scmp.ne.s32.totalorder %s23, %s39
    %p41 = scmp.eq.s32.totalorder %s15, 0
    %p42 = por %p40, %p41
    %s44 = sadd.s32 %s43, 1
    %p47 = scmp.eq.s32.totalorder %s9, 1
    %p48 = scmp.ne.s32.totalorder %s43, %s45
    %p49 = scmp.eq.s32.totalorder %s9, 0
    %p50 = por %p48, %p49
    %p51 = scmp.ne.s32.totalorder %s43, %s45
    %p52 = scmp.eq.s32.totalorder %s14, 1
    %p53 = por %p51, %p52
    %p54 = scmp.ne.s32.totalorder %s45, %s46
    %p55 = scmp.eq.s32.totalorder %s14, 0
    %p56 = por %p54, %p55
    %p57 = scmp.ne.s32.totalorder %s45, %s46
    %p58 = scmp.eq.s32.totalorder %s15, 1
    %p59 = por %p57, %p58
    %p61 = scmp.ne.s32.totalorder %s46, %s60
    %p62 = scmp.eq.s32.totalorder %s15, 0
    %p63 = por %p61, %p62
    %s65 = sadd.s32 %s64, 1
    %p68 = scmp.eq.s32.totalorder %s9, 1
    %p69 = scmp.ne.s32.totalorder %s64, %s66
    %p70 = scmp.eq.s32.totalorder %s9, 0
    %p71 = por %p69, %p70
    %p72 = scmp.ne.s32.totalorder %s64, %s66
    %p73 = scmp.eq.s32.totalorder %s14, 1
    %p74 = por %p72, %p73
    %p75 = scmp.ne.s32.totalorder %s66, %s67
    %p76 = scmp.eq.s32.totalorder %s14, 0
    %p77 = por %p75, %p76
    %p78 = scmp.ne.s32.totalorder %s66, %s67
    %p79 = scmp.eq.s32.totalorder %s15, 1
    %p80 = por %p78, %p79
    %p82 = scmp.ne.s32.totalorder %s67, %s81
    %p83 = scmp.eq.s32.totalorder %s15, 0
    %p84 = por %p82, %p83
    %s85 = ssub.s32 %s9, %s16
    %p86 = scmp.eq.s32.totalorder %s85, 0
    %s88 = sadd.s32 %s87, 1
    %s89 = scalar_select %p86, %s87, %s88
    %p92 = pneg %p86
    %p93 = scmp.eq.s32.totalorder %s9, 1
    %p94 = por %p92, %p93
    %p95 = scmp.ne.s32.totalorder %s87, %s90
    %p96 = scmp.eq.s32.totalorder %s9, 0
    %p97 = por %p95, %p96
    %p98 = scmp.ne.s32.totalorder %s87, %s90
    %p99 = scmp.eq.s32.totalorder %s14, 1
    %p100 = por %p98, %p99
    %p101 = scmp.ne.s32.totalorder %s90, %s91
    %p102 = scmp.eq.s32.totalorder %s14, 0
    %p103 = por %p101, %p102
    %p104 = scmp.ne.s32.totalorder %s90, %s91
    %p105 = scmp.eq.s32.totalorder %s15, 1
    %p106 = por %p104, %p105
    %p108 = scmp.ne.s32.totalorder %s91, %s107
    %p109 = scmp.eq.s32.totalorder %s15, 0
    %p110 = por %p108, %p109
    %p111 = scmp.le.s32.totalorder 1, %s9
    %p112 = scmp.lt.s32.totalorder %s9, 3
    %p113 = pnand %p111, %p112
    %p114 = pneg %p113
    // Predicated region
    $region9: #{downsample_conv2d.1} parent=5 // pred_check
      _
    $region10: #{downsample_conv2d.1} parent=5 // pred_check_branch
      %116 = sbr.rel (%p113) target = $region12
    $region11: #{downsample_conv2d.1} parent=5 // pred_region
      %s117 = ssub.s32 %s9, 1
      // Predicated region
      $region13: #{downsample_conv2d.1} parent=11 // pred_check
        %p118 = pneg %p56
      $region14: #{downsample_conv2d.1} parent=11 // pred_check_branch
        %120 = sbr.rel (%p118) target = $region16
      $region15: #{downsample_conv2d.1} parent=11 // pred_region
        _
      $region16: #{downsample_conv2d.1} parent=11 // pred_fallthru
        _
      // Predicated region
      $region17: #{downsample_conv2d.1} parent=11 // pred_check
        %p121 = pneg %p77
      $region18: #{downsample_conv2d.1} parent=11 // pred_check_branch
        %123 = sbr.rel (%p121) target = $region20
      $region19: #{downsample_conv2d.1} parent=11 // pred_region
        _
      $region20: #{downsample_conv2d.1} parent=11 // pred_fallthru
        _
    $region12: #{downsample_conv2d.1} parent=5 // pred_fallthru
      _
    %p124 = scmp.lt.s32.totalorder %s9, 2
    // Predicated region
    $region21: #{downsample_conv2d.1} parent=5 // pred_check
      %p125 = pneg %p124
    $region22: #{downsample_conv2d.1} parent=5 // pred_check_branch
      %127 = sbr.rel (%p125) target = $region24
    $region23: #{downsample_conv2d.1} parent=5 // pred_region
      // Predicated region
      $region25: #{downsample_conv2d.1} parent=23 // pred_check
        %p128 = pneg %p29
      $region26: #{downsample_conv2d.1} parent=23 // pred_check_branch
        %130 = sbr.rel (%p128) target = $region28
      $region27: #{downsample_conv2d.1} parent=23 // pred_region
        %p131 = scmp.lt.s32.totalorder %s9, 1
        %s132 = scalar_select %p131, %s9, 1
        %s133 = smul.addr %s132, 4
        %s134 = smul.addr %s133, 4
        %s135 = scalar_lea.vmem %s0, %s134
      $region28: #{downsample_conv2d.1} parent=23 // pred_fallthru
        _
    $region24: #{downsample_conv2d.1} parent=5 // pred_fallthru
      _
    %p136 = scmp.le.s32.totalorder 1, %s9
    %p137 = scmp.lt.s32.totalorder %s9, 3
    %p138 = pnand %p136, %p137
    %p139 = pneg %p138
    // Predicated region
    $region29: #{downsample_conv2d.1} parent=5 // pred_check
      _
    $region30: #{downsample_conv2d.1} parent=5 // pred_check_branch
      %141 = sbr.rel (%p138) target = $region32
    $region31: #{downsample_conv2d.1} parent=5 // pred_region
      %s142 = ssub.s32 %s9, 1
      %p143 = scmp.lt.s32.totalorder %s14, 1
      %s144 = scalar_select %p143, %s14, 1
      %s145 = smul.addr %s144, 4
      %s146 = smul.addr %s145, 4
      %s147 = scalar_lea.vmem %s0, %s146
      %p148 = pneg %p35
      %p149 = pneg %p32
      %p150 = pneg %p56
      %p151 = pneg %p53
      %p152 = pneg %p77
      %p153 = pneg %p74
      %p154 = pneg %p103
      %p155 = pneg %p100
      %p156 = scmp.lt.s32.totalorder %s14, 1
      %s157 = scalar_select %p156, %s14, 1
      %s158 = smul.addr %s157, 8
      %s159 = scalar_lea.vmem %s3, %s158
      %p160 = scmp.lt.s32.totalorder %s14, 1
      %s161 = scalar_select %p160, %s14, 1
      %s162 = smul.addr %s161, 4
      %s163 = smul.addr %s162, 4
      %s164 = scalar_lea.vmem %s0, %s163
      %p165 = scmp.lt.s32.totalorder %s14, 1
      %s166 = scalar_select %p165, %s14, 1
      %s167 = smul.addr %s166, 8
      %s168 = scalar_lea.vmem %s3, %s167
      %v170 = vld [vmem:[%s164] sm:$0xff]
      %v171 = vld [vmem:[%s1] sm:$0xf]
      %v172 = vld [vmem:[%s1 + $0x4] sm:$0xf]
      %v173 = vld [vmem:[%s1 + $0x8] sm:$0xf]
      %v174 = vld [vmem:[%s1 + $0xc] sm:$0xf]
      %v175 = vld [vmem:[%s1 + $0x10] sm:$0xf]
      %v176 = vld [vmem:[%s1 + $0x14] sm:$0xf]
      %v177 = vld [vmem:[%s1 + $0x18] sm:$0xf]
      %v178 = vld [vmem:[%s1 + $0x1c] sm:$0xf]
      %v179 = vld [vmem:[%s1 + $0x20] sm:$0xf]
      %v180 = vld [vmem:[%s1 + $0x24] sm:$0xf]
      %v181 = vld [vmem:[%s1 + $0x28] sm:$0xf]
      %v182 = vld [vmem:[%s1 + $0x2c] sm:$0xf]
      %v183 = vld [vmem:[%s1 + $0x30] sm:$0xf]
      %v184 = vld [vmem:[%s1 + $0x34] sm:$0xf]
      %v185 = vld [vmem:[%s1 + $0x38] sm:$0xf]
      %v186 = vld [vmem:[%s1 + $0x3c] sm:$0xf]
      %v187 = vld [vmem:[%s1 + $0x40] sm:$0xf]
      %v188 = vld [vmem:[%s1 + $0x44] sm:$0xf]
      %v189 = vld [vmem:[%s1 + $0x48] sm:$0xf]
      %v190 = vld [vmem:[%s1 + $0x4c] sm:$0xf]
      %v192 = vunpack.c.l.b16 %v170
      %v193 = vunpack.c.h.b16 %v170
      %v194 = vpack.c.b16 %v192, %v192
      %v195 = vpack.c.b16 %v193, %v193
      %v217 = vunpack.c.l.b16 %v171
      %v218 = vunpack.c.l.b16 %v172
      %v219 = vunpack.c.l.b16 %v173
      %v220 = vunpack.c.l.b16 %v174
      %v221 = vunpack.c.l.b16 %v175
      %v222 = vunpack.c.l.b16 %v176
      %v223 = vunpack.c.l.b16 %v177
      %v224 = vunpack.c.l.b16 %v178
      %v225 = vunpack.c.l.b16 %v179
      %v226 = vunpack.c.l.b16 %v180
      %v227 = vunpack.c.l.b16 %v181
      %v228 = vunpack.c.l.b16 %v182
      %v229 = vunpack.c.l.b16 %v183
      %v230 = vunpack.c.l.b16 %v184
      %v231 = vunpack.c.l.b16 %v185
      %v232 = vunpack.c.l.b16 %v186
      %v233 = vunpack.c.l.b16 %v187
      %v234 = vunpack.c.l.b16 %v188
      %v235 = vunpack.c.l.b16 %v189
      %v236 = vunpack.c.l.b16 %v190
      %v237 = vpack.c.b16 %v218, %v217
      %v238 = vpack.c.b16 %v220, %v219
      %v239 = vpack.c.b16 %v222, %v221
      %v240 = vpack.c.b16 %v224, %v223
      %v241 = vpack.c.b16 %v226, %v225
      %v242 = vpack.c.b16 %v228, %v227
      %v243 = vpack.c.b16 %v230, %v229
      %v244 = vpack.c.b16 %v232, %v231
      %v245 = vpack.c.b16 %v234, %v233
      %v246 = vpack.c.b16 %v236, %v235
      %vm257 = vcmask 261120
      %v259 = vsel %vm257, %v195, 0
      %261 = vmatprep.subr.bf16.mxu0 0
      %262 = vmatpush1.bf16.msra.mxu0 %v244
      %263 = vmatprep.subr.bf16.mxu0 0
      %264 = vmatpush1.bf16.msra.mxu0 %v243
      %265 = vmatprep.subr.bf16.mxu0 0
      %266 = vmatpush1.bf16.msra.mxu0 %v242
      %267 = vmatprep.subr.bf16.mxu0 0
      %268 = vmatpush1.bf16.msra.mxu0 %v241
      %269 = vmatprep.subr.bf16.mxu0 0
      %270 = vmatpush1.bf16.msra.mxu0 %v240
      %271 = vmatprep.subr.bf16.mxu0 0
      %272 = vmatpush1.bf16.msra.mxu0 %v239
      %273 = vmatprep.subr.bf16.mxu0 0
      %274 = vmatpush1.bf16.msra.mxu0 %v238
      %275 = vmatprep.subr.bf16.mxu0 0
      %276 = vmatpush1.bf16.msra.mxu0 %v237
      %277 = vmatprep.subr.bf16.mxu0 0
      %278 = vmatpush2.bf16.msra.mxu0 0
      %279 = vmatprep.subr.bf16.mxu0 0
      %280 = vmatpush2.bf16.msra.mxu0 0
      %281 = vmatprep.subr.bf16.mxu0 0
      %282 = vmatpush2.bf16.msra.mxu0 0
      %283 = vmatprep.subr.bf16.mxu0 0
      %284 = vmatpush2.bf16.msra.mxu0 0
      %285 = vmatprep.subr.bf16.mxu0 0
      %286 = vmatpush2.bf16.msra.mxu0 0
      %287 = vmatprep.subr.bf16.mxu0 0
      %288 = vmatpush2.bf16.msra.mxu0 0
      %289 = vmatprep.subr.bf16.mxu0 0
      %290 = vmatpush2.bf16.msra.mxu0 %v246
      %291 = vmatprep.subr.bf16.mxu0 0
      %292 = vmatpush2.bf16.msra.mxu0 %v245
      %293 = vmatprep.mubr.bf16.mxu0 %v259
      %294 = vmatmul.mubr.bf16.gmra.mxu0 %v194
      %v295 = vpop.f32.mrf.mxu0
      %v296 = vadd.f32 0.0, %v295
      %v297 = vpop.f32.mrf.mxu0
      %v298 = vpop.f32.mrf.mxu0
      %v299 = vpop.f32.mrf.mxu0
      %300 = vdwg.mxu0
      %vm301 = vcmask 523264
      %302 = vst.msk [vmem:[#allocation2] sm:$0xff] %vm301, %v296
      %v303 = vld [vmem:[#allocation2] sm:$0xff]
      %v304 = vld [vmem:[%s164] sm:$0xff]
      %v305 = vld [vmem:[%s164 + $0x8] sm:$0x11]
      %s306 = scalar_lea.vmem %s1, 80
      %v307 = vld [vmem:[%s306] sm:$0xf]
      %v308 = vld [vmem:[%s306 + $0x4] sm:$0xf]
      %v309 = vld [vmem:[%s306 + $0x8] sm:$0xf]
      %v310 = vld [vmem:[%s306 + $0xc] sm:$0xf]
      %v311 = vld [vmem:[%s306 + $0x10] sm:$0xf]
      %v312 = vld [vmem:[%s306 + $0x14] sm:$0xf]
      %v313 = vld [vmem:[%s306 + $0x18] sm:$0xf]
      %v314 = vld [vmem:[%s306 + $0x1c] sm:$0xf]
      %v315 = vld [vmem:[%s306 + $0x20] sm:$0xf]
      %v316 = vld [vmem:[%s306 + $0x24] sm:$0xf]
      %v317 = vld [vmem:[%s306 + $0x28] sm:$0xf]
      %v318 = vld [vmem:[%s306 + $0x2c] sm:$0xf]
      %v319 = vld [vmem:[%s306 + $0x30] sm:$0xf]
      %v320 = vld [vmem:[%s306 + $0x34] sm:$0xf]
      %v321 = vld [vmem:[%s306 + $0x38] sm:$0xf]
      %v322 = vld [vmem:[%s306 + $0x3c] sm:$0xf]
      %v323 = vld [vmem:[%s306 + $0x40] sm:$0xf]
      %v324 = vld [vmem:[%s306 + $0x44] sm:$0xf]
      %v325 = vld [vmem:[%s306 + $0x48] sm:$0xf]
      %v326 = vld [vmem:[%s306 + $0x4c] sm:$0xf]
      %v329 = vunpack.c.l.b16 %v304
      %v330 = vunpack.c.h.b16 %v304
      %v331 = vunpack.c.l.b16 %v305
      %v332 = vunpack.c.h.b16 %v305
      %v333 = vpack.c.b16 %v331, %v329
      %v334 = vpack.c.b16 %v332, %v330
      %v336 = vshrl.u32 %v333, 16
      %v338 = vshll.u32 %v333, 16
      %v340 = vrot.slane %v338, 1
      %v341 = vor.u32 %v336, %v340
      %v343 = vshrl.u32 %v334, 16
      %v345 = vshll.u32 %v334, 16
      %v347 = vrot.slane %v345, 1
      %v348 = vor.u32 %v343, %v347
      %v370 = vunpack.c.l.b16 %v307
      %v371 = vunpack.c.l.b16 %v308
      %v372 = vunpack.c.l.b16 %v309
      %v373 = vunpack.c.l.b16 %v310
      %v374 = vunpack.c.l.b16 %v311
      %v375 = vunpack.c.l.b16 %v312
      %v376 = vunpack.c.l.b16 %v313
      %v377 = vunpack.c.l.b16 %v314
      %v378 = vunpack.c.l.b16 %v315
      %v379 = vunpack.c.l.b16 %v316
      %v380 = vunpack.c.l.b16 %v317
      %v381 = vunpack.c.l.b16 %v318
      %v382 = vunpack.c.l.b16 %v319
      %v383 = vunpack.c.l.b16 %v320
      %v384 = vunpack.c.l.b16 %v321
      %v385 = vunpack.c.l.b16 %v322
      %v386 = vunpack.c.l.b16 %v323
      %v387 = vunpack.c.l.b16 %v324
      %v388 = vunpack.c.l.b16 %v325
      %v389 = vunpack.c.l.b16 %v326
      %v390 = vpack.c.b16 %v371, %v370
      %v391 = vpack.c.b16 %v373, %v372
      %v392 = vpack.c.b16 %v375, %v374
      %v393 = vpack.c.b16 %v377, %v376
      %v394 = vpack.c.b16 %v379, %v378
      %v395 = vpack.c.b16 %v381, %v380
      %v396 = vpack.c.b16 %v383, %v382
      %v397 = vpack.c.b16 %v385, %v384
      %v398 = vpack.c.b16 %v387, %v386
      %v399 = vpack.c.b16 %v389, %v388
      %v411 = vsel %vm257, %v348, 0
      %413 = vmatprep.subr.bf16.mxu0 0
      %414 = vmatpush1.bf16.msra.mxu0 %v397
      %415 = vmatprep.subr.bf16.mxu0 0
      %416 = vmatpush1.bf16.msra.mxu0 %v396
      %417 = vmatprep.subr.bf16.mxu0 0
      %418 = vmatpush1.bf16.msra.mxu0 %v395
      %419 = vmatprep.subr.bf16.mxu0 0
      %420 = vmatpush1.bf16.msra.mxu0 %v394
      %421 = vmatprep.subr.bf16.mxu0 0
      %422 = vmatpush1.bf16.msra.mxu0 %v393
      %423 = vmatprep.subr.bf16.mxu0 0
      %424 = vmatpush1.bf16.msra.mxu0 %v392
      %425 = vmatprep.subr.bf16.mxu0 0
      %426 = vmatpush1.bf16.msra.mxu0 %v391
      %427 = vmatprep.subr.bf16.mxu0 0
      %428 = vmatpush1.bf16.msra.mxu0 %v390
      %429 = vmatprep.subr.bf16.mxu0 0
      %430 = vmatpush2.bf16.msra.mxu0 0
      %431 = vmatprep.subr.bf16.mxu0 0
      %432 = vmatpush2.bf16.msra.mxu0 0
      %433 = vmatprep.subr.bf16.mxu0 0
      %434 = vmatpush2.bf16.msra.mxu0 0
      %435 = vmatprep.subr.bf16.mxu0 0
      %436 = vmatpush2.bf16.msra.mxu0 0
      %437 = vmatprep.subr.bf16.mxu0 0
      %438 = vmatpush2.bf16.msra.mxu0 0
      %439 = vmatprep.subr.bf16.mxu0 0
      %440 = vmatpush2.bf16.msra.mxu0 0
      %441 = vmatprep.subr.bf16.mxu0 0
      %442 = vmatpush2.bf16.msra.mxu0 %v399
      %443 = vmatprep.subr.bf16.mxu0 0
      %444 = vmatpush2.bf16.msra.mxu0 %v398
      %445 = vmatprep.mubr.bf16.mxu0 %v411
      %446 = vmatmul.mubr.bf16.gmra.mxu0 %v341
      %v447 = vpop.f32.mrf.mxu0
      %v448 = vadd.f32 0.0, %v447
      %v449 = vpop.f32.mrf.mxu0
      %v450 = vpop.f32.mrf.mxu0
      %v451 = vpop.f32.mrf.mxu0
      %452 = vdwg.mxu0
      %v453 = vadd.f32 %v303, %v448
      %454 = vst.msk [vmem:[#allocation2] sm:$0xff] %vm301, %v453
      %v455 = vld [vmem:[#allocation2] sm:$0xff]
      %v456 = vld [vmem:[%s164] sm:$0xee]
      %v457 = vld [vmem:[%s164 + $0x8] sm:$0x11]
      %s458 = scalar_lea.vmem %s1, 160
      %v459 = vld [vmem:[%s458] sm:$0xf]
      %v460 = vld [vmem:[%s458 + $0x4] sm:$0xf]
      %v461 = vld [vmem:[%s458 + $0x8] sm:$0xf]
      %v462 = vld [vmem:[%s458 + $0xc] sm:$0xf]
      %v463 = vld [vmem:[%s458 + $0x10] sm:$0xf]
      %v464 = vld [vmem:[%s458 + $0x14] sm:$0xf]
      %v465 = vld [vmem:[%s458 + $0x18] sm:$0xf]
      %v466 = vld [vmem:[%s458 + $0x1c] sm:$0xf]
      %v467 = vld [vmem:[%s458 + $0x20] sm:$0xf]
      %v468 = vld [vmem:[%s458 + $0x24] sm:$0xf]
      %v469 = vld [vmem:[%s458 + $0x28] sm:$0xf]
      %v470 = vld [vmem:[%s458 + $0x2c] sm:$0xf]
      %v471 = vld [vmem:[%s458 + $0x30] sm:$0xf]
      %v472 = vld [vmem:[%s458 + $0x34] sm:$0xf]
      %v473 = vld [vmem:[%s458 + $0x38] sm:$0xf]
      %v474 = vld [vmem:[%s458 + $0x3c] sm:$0xf]
      %v475 = vld [vmem:[%s458 + $0x40] sm:$0xf]
      %v476 = vld [vmem:[%s458 + $0x44] sm:$0xf]
      %v477 = vld [vmem:[%s458 + $0x48] sm:$0xf]
      %v478 = vld [vmem:[%s458 + $0x4c] sm:$0xf]
      %v481 = vunpack.c.l.b16 %v456
      %v482 = vunpack.c.h.b16 %v456
      %v483 = vunpack.c.l.b16 %v457
      %v484 = vunpack.c.h.b16 %v457
      %v485 = vpack.c.b16 %v483, %v481
      %v486 = vpack.c.b16 %v484, %v482
      %v487 = vrot.slane %v485, 1
      %v488 = vrot.slane %v486, 1
      %v510 = vunpack.c.l.b16 %v459
      %v511 = vunpack.c.l.b16 %v460
      %v512 = vunpack.c.l.b16 %v461
      %v513 = vunpack.c.l.b16 %v462
      %v514 = vunpack.c.l.b16 %v463
      %v515 = vunpack.c.l.b16 %v464
      %v516 = vunpack.c.l.b16 %v465
      %v517 = vunpack.c.l.b16 %v466
      %v518 = vunpack.c.l.b16 %v467
      %v519 = vunpack.c.l.b16 %v468
      %v520 = vunpack.c.l.b16 %v469
      %v521 = vunpack.c.l.b16 %v470
      %v522 = vunpack.c.l.b16 %v471
      %v523 = vunpack.c.l.b16 %v472
      %v524 = vunpack.c.l.b16 %v473
      %v525 = vunpack.c.l.b16 %v474
      %v526 = vunpack.c.l.b16 %v475
      %v527 = vunpack.c.l.b16 %v476
      %v528 = vunpack.c.l.b16 %v477
      %v529 = vunpack.c.l.b16 %v478
      %v530 = vpack.c.b16 %v511, %v510
      %v531 = vpack.c.b16 %v513, %v512
      %v532 = vpack.c.b16 %v515, %v514
      %v533 = vpack.c.b16 %v517, %v516
      %v534 = vpack.c.b16 %v519, %v518
      %v535 = vpack.c.b16 %v521, %v520
      %v536 = vpack.c.b16 %v523, %v522
      %v537 = vpack.c.b16 %v525, %v524
      %v538 = vpack.c.b16 %v527, %v526
      %v539 = vpack.c.b16 %v529, %v528
      %v551 = vsel %vm257, %v488, 0
      %553 = vmatprep.subr.bf16.mxu0 0
      %554 = vmatpush1.bf16.msra.mxu0 %v537
      %555 = vmatprep.subr.bf16.mxu0 0
      %556 = vmatpush1.bf16.msra.mxu0 %v536
      %557 = vmatprep.subr.bf16.mxu0 0
      %558 = vmatpush1.bf16.msra.mxu0 %v535
      %559 = vmatprep.subr.bf16.mxu0 0
      %560 = vmatpush1.bf16.msra.mxu0 %v534
      %561 = vmatprep.subr.bf16.mxu0 0
      %562 = vmatpush1.bf16.msra.mxu0 %v533
      %563 = vmatprep.subr.bf16.mxu0 0
      %564 = vmatpush1.bf16.msra.mxu0 %v532
      %565 = vmatprep.subr.bf16.mxu0 0
      %566 = vmatpush1.bf16.msra.mxu0 %v531
      %567 = vmatprep.subr.bf16.mxu0 0
      %568 = vmatpush1.bf16.msra.mxu0 %v530
      %569 = vmatprep.subr.bf16.mxu0 0
      %570 = vmatpush2.bf16.msra.mxu0 0
      %571 = vmatprep.subr.bf16.mxu0 0
      %572 = vmatpush2.bf16.msra.mxu0 0
      %573 = vmatprep.subr.bf16.mxu0 0
      %574 = vmatpush2.bf16.msra.mxu0 0
      %575 = vmatprep.subr.bf16.mxu0 0
      %576 = vmatpush2.bf16.msra.mxu0 0
      %577 = vmatprep.subr.bf16.mxu0 0
      %578 = vmatpush2.bf16.msra.mxu0 0
      %579 = vmatprep.subr.bf16.mxu0 0
      %580 = vmatpush2.bf16.msra.mxu0 0
      %581 = vmatprep.subr.bf16.mxu0 0
      %582 = vmatpush2.bf16.msra.mxu0 %v539
      %583 = vmatprep.subr.bf16.mxu0 0
      %584 = vmatpush2.bf16.msra.mxu0 %v538
      %585 = vmatprep.mubr.bf16.mxu0 %v551
      %586 = vmatmul.mubr.bf16.gmra.mxu0 %v487
      %v587 = vpop.f32.mrf.mxu0
      %v588 = vadd.f32 0.0, %v587
      %v589 = vpop.f32.mrf.mxu0
      %v590 = vpop.f32.mrf.mxu0
      %v591 = vpop.f32.mrf.mxu0
      %592 = vdwg.mxu0
      %v593 = vadd.f32 %v455, %v588
      %594 = vst.msk [vmem:[#allocation2] sm:$0xff] %vm301, %v593
      %v595 = vld [vmem:[#allocation2] sm:$0xff]
      %v596 = vld [vmem:[%s2] sm:$0x1]
      %v598 = vlaneseq
      %v599 = vshrl.u32 %v598, 7
      %v600 = vsub.s32 0, %v599
      %v601 = vrot.slane %v596, %v600
      %v603 = vadd.f32 %v595, %v601
      %604 = vst.msk [vmem:[%s168] sm:$0xff] %vm301, %v603
      %p605 = scmp.lt.s32.totalorder %s14, 1
      %s606 = scalar_select %p605, %s14, 1
      %s607 = smul.addr %s606, 8
      %s608 = scalar_lea.vmem %s3, %s607
      // Predicated region
      $region33: #{downsample_conv2d.1} parent=31 // pred_check
        %p609 = pneg %p100
      $region34: #{downsample_conv2d.1} parent=31 // pred_check_branch
        %611 = sbr.rel (%p609) target = $region36
      $region35: #{downsample_conv2d.1} parent=31 // pred_region
        _
      $region36: #{downsample_conv2d.1} parent=31 // pred_fallthru
        _
    $region32: #{downsample_conv2d.1} parent=5 // pred_fallthru
      _
    %p612 = scmp.le.s32.totalorder 2, %s9
    // Predicated region
    $region37: #{downsample_conv2d.1} parent=5 // pred_check
      %p613 = pneg %p612
    $region38: #{downsample_conv2d.1} parent=5 // pred_check_branch
      %615 = sbr.rel (%p613) target = $region40
    $region39: #{downsample_conv2d.1} parent=5 // pred_region
      %s616 = ssub.s32 %s9, 2
      // Predicated region
      $region41: #{downsample_conv2d.1} parent=39 // pred_check
        %p617 = pneg %p106
      $region42: #{downsample_conv2d.1} parent=39 // pred_check_branch
        %619 = sbr.rel (%p617) target = $region44
      $region43: #{downsample_conv2d.1} parent=39 // pred_region
        %p620 = scmp.lt.s32.totalorder %s15, 1
        %s621 = scalar_select %p620, %s15, 1
        %s622 = smul.addr %s621, 8
        %s623 = scalar_lea.vmem %s3, %s622
      $region44: #{downsample_conv2d.1} parent=39 // pred_fallthru
        _
    $region40: #{downsample_conv2d.1} parent=5 // pred_fallthru
      _
  $region6: #{downsample_conv2d.1} parent=0 // loop_footer
    %s13 = sadd.s32 1, %s9
  $region7: #{downsample_conv2d.1} parent=0 // loop_footer_branch
    %8 = sbr.rel target = $region3
  $region8: #{downsample_conv2d.1} parent=0 // loop_exit
    _

</llo_original>
